<compile_context>
chip_gen: v7x
topology: tpu7x:2x2x1
jax: 0.10.0
libtpu: 0.0.40
codegen_flags: <defaults>
</compile_context>

<pallas_src>
import numpy as np
import jax
import jax.numpy as jnp
from jax.experimental import pallas as pl
from jax.experimental.pallas import tpu as pltpu


_LANE_CANDIDATES = (1024, 512, 256, 128)   # multiples of 128 -> unmasked vst
_MIN_TILE_BYTES = 2 << 20
_MAX_TILE_BYTES = 8 << 20


def _round_up(n, m):
    return ((n + m - 1) // m) * m


def _target_tile_bytes():
    """Per-block byte budget, derived from this chip generation's VMEM size."""
    try:
        vmem = int(pltpu.get_tpu_info().vmem_capacity_bytes)
    except Exception:
        vmem = 64 << 20                       # conservative fallback (v7x-sized)
    # 4 tiles live at once (in + out, double-buffered); keep them <= vmem/4.
    return int(max(_MIN_TILE_BYTES, min(_MAX_TILE_BYTES, vmem // 16)))


def _scale_mul_kernel(scale_ref, x_ref, o_ref):
    # scale_ref: SMEM (1,) float32, already exp()'d and clipped in the wrapper.
    # Multiply in f32 (VALU has ample slack in a mem-bound kernel), cast product.
    o_ref[...] = (x_ref[...].astype(jnp.float32) * scale_ref[0]).astype(o_ref.dtype)


def learnable_logit_scaling(x, log_logit_scale, *, max_logit_scale=100.0):
    """clip(exp(log_logit_scale), max=max_logit_scale) * x via Pallas."""
    if not jnp.issubdtype(x.dtype, jnp.floating):
        raise TypeError(
            f"learnable_logit_scaling expects a floating dtype, got {x.dtype}")

    orig_shape = x.shape
    n = int(x.size)
    itemsize = jnp.dtype(x.dtype).itemsize

    # Scalar forward math (one element) stays in plain JAX; the kernel only
    # streams the elementwise multiply.
    ls = jnp.asarray(log_logit_scale, jnp.float32).reshape(())
    scale = jnp.minimum(jnp.exp(ls), jnp.float32(max_logit_scale)).reshape((1,))

    # --- choose a copy-free lane-dense layout whenever possible ------------
    lane = next((c for c in _LANE_CANDIDATES if n % c == 0), None)
    padded = lane is None
    if padded:
        lane = 128                            # minimal pad for ragged sizes only
        n_eff = _round_up(n, lane)
    else:
        n_eff = n
    rows = n_eff // lane

    flat = x.reshape((-1,))
    if padded:
        flat = jnp.pad(flat, (0, n_eff - n))
    x2d = flat.reshape((rows, lane))          # copy-free on the common path

    # --- tile sizing --------------------------------------------------------
    row_align = max(8, 32 // itemsize)        # sublane packing (fp32:8, bf16:16)
    tile_bytes = _target_tile_bytes()
    block_rows = max(row_align,
                     (tile_bytes // (lane * itemsize)) // row_align * row_align)
    block_rows = min(block_rows, _round_up(rows, row_align))
    grid = (pl.cdiv(rows, block_rows),)       # ragged last block is masked

    grid_spec = pltpu.PrefetchScalarGridSpec(
        num_scalar_prefetch=1,                # scale -> SMEM
        grid=grid,
        in_specs=[pl.BlockSpec((block_rows, lane), lambda i, s: (i, 0))],
        out_specs=pl.BlockSpec((block_rows, lane), lambda i, s: (i, 0)),
    )

    kwargs = {}
    if padded:
        # x2d is a kernel-local temporary (produced by jnp.pad): let the
        # output reuse its HBM buffer.  (Operand 0 is the prefetched scalar.)
        kwargs["input_output_aliases"] = {1: 0}

    out2d = pl.pallas_call(
        _scale_mul_kernel,
        out_shape=jax.ShapeDtypeStruct((rows, lane), x.dtype),
        grid_spec=grid_spec,
        compiler_params=pltpu.CompilerParams(
            # TODO(synk): verify the single parallel axis actually shards
            # across both v7x TensorCores; otherwise switch to CORE_PARALLEL.
            dimension_semantics=("parallel",),
            vmem_limit_bytes=int(min(48 << 20, 8 * tile_bytes)),
        ),
        cost_estimate=pl.CostEstimate(
            flops=n_eff,
            transcendentals=0,
            bytes_accessed=2 * n_eff * itemsize,
        ),
        **kwargs,
    )(scale, x2d)

    out = out2d.reshape((-1,))
    if padded:
        out = out[:n]
    return out.reshape(orig_shape)


if __name__ == "__main__":
    # Deterministic parameter init, matching the module's __init__:
    # log_logit_scale = log(1 / 0.07), max_logit_scale = 100, learnable=True
    init_logit_scale = 1.0 / 0.07
    max_logit_scale = 100.0
    log_logit_scale = jnp.asarray(np.log(init_logit_scale), jnp.float32)

    key = jax.random.PRNGKey(0)
    k0, k1 = jax.random.split(key)

    # Main example: (batch_sz=2, seq_len=8, dim=32) — copy-free lane-dense path.
    x = jax.random.normal(k0, (2, 8, 32), dtype=jnp.float32)
    out = jax.block_until_ready(
        learnable_logit_scaling(x, log_logit_scale, max_logit_scale=max_logit_scale))
    ref = jnp.minimum(jnp.exp(log_logit_scale), max_logit_scale) * x
    np.testing.assert_allclose(np.asarray(out), np.asarray(ref),
                               rtol=1e-6, atol=1e-6)

    # Ragged size: exercises the minimal-pad fallback path.
    x2 = jax.random.normal(k1, (3, 5, 7), dtype=jnp.float32)
    out2 = jax.block_until_ready(
        learnable_logit_scaling(x2, log_logit_scale, max_logit_scale=max_logit_scale))
    ref2 = jnp.minimum(jnp.exp(log_logit_scale), max_logit_scale) * x2
    np.testing.assert_allclose(np.asarray(out2), np.asarray(ref2),
                               rtol=1e-6, atol=1e-6)

    print("KERNEL_OK")
</pallas_src>

<mosaic_0001>
module attributes {stable_mosaic.version = 11 : i64} {
  func.func @_scale_mul_kernel(%arg0: i32, %arg1: memref<1xf32, #tpu.memory_space<smem>>, %arg2: memref<8x512xf32, #tpu.memory_space<vmem>>, %arg3: memref<8x512xf32, #tpu.memory_space<vmem>>) attributes {dimension_semantics = [#tpu.dimension_semantics<parallel>], iteration_bounds = array<i64: 1>, scalar_prefetch = 1 : i64, scratch_operands = 0 : i64, tpu.core_type = #tpu.core_type<tc>, window_params = [{transform_indices = @transform_0, window_bounds = array<i64: 8, 512>}, {transform_indices = @transform_1, window_bounds = array<i64: 8, 512>}]} {
    %c0 = arith.constant 0 : index
    %c0_0 = arith.constant 0 : index
    %0 = vector.load %arg2[%c0, %c0_0] : memref<8x512xf32, #tpu.memory_space<vmem>>, vector<8x512xf32>
    %c0_1 = arith.constant 0 : index
    %1 = memref.load %arg1[%c0_1] : memref<1xf32, #tpu.memory_space<smem>>
    %2 = vector.broadcast %1 : f32 to vector<8x512xf32>
    %3 = arith.mulf %0, %2 : vector<8x512xf32>
    %c0_2 = arith.constant 0 : index
    %c0_3 = arith.constant 0 : index
    %4 = vector.load %arg3[%c0_2, %c0_3] : memref<8x512xf32, #tpu.memory_space<vmem>>, vector<8x512xf32>
    tpu.vector_store %arg3[%c0_2, %c0_3], %3 {strides = array<i32>} : memref<8x512xf32, #tpu.memory_space<vmem>>, vector<8x512xf32>,
    return
  }
  func.func @transform_0(%arg0: i32, %arg1: memref<1xf32, #tpu.memory_space<smem>>) -> (i32, i32) {
    %c0_i32 = arith.constant 0 : i32
    %c0_i32_0 = arith.constant 0 : i32
    return %arg0, %c0_i32 : i32, i32
  }
  func.func @transform_1(%arg0: i32, %arg1: memref<1xf32, #tpu.memory_space<smem>>) -> (i32, i32) {
    %c0_i32 = arith.constant 0 : i32
    %c0_i32_0 = arith.constant 0 : i32
    return %arg0, %c0_i32 : i32, i32
  }
}

</mosaic_0001>

<llo_original>
// kernel: tpu_custom_call.1
$region0: #{tpu_custom_call.1}
  #allocation0 [shape = 'u32[]', space=smem, size = 0x4, offset = 0x4, fixed_abs, tag = 'smem constant byte address 0x4 - core index']
  #allocation1 [shape = 'u32[144,128]{1,0:T(1,128)}', space=vmem, size = 0x12000, scoped, tag = 'internal scratch']
  #allocation2 [shape = 's32[1]{0}', space=sflag, size = 0x4, scoped, tag = 'scoped memory for tpu_custom_call.1']
  #allocation3 [shape = 'f32[1]{0:T(128)S(6)}', space=smem, size = 0x200, scoped, tag = 'prefetched SMEM operand 0']
  %s0 = inlined_call_operand.<no memory space> [shape: f32[1], index: 0, kind: input, shape index: {}]
  %s1 = inlined_call_operand.hbm [shape: f32[1,512], index: 1, kind: input, shape index: {}]
  %s2 = inlined_call_operand.hbm [shape: f32[1,512], index: 2, kind: output, shape index: {}]
  %s3 = sld [smem:[#allocation0]]
  $region18: #{tpu_custom_call.1} parent=0
    _
  %s5 = ssub.s32 1, %s3
  %s6 = scalar_select 0, %s5, %s3
  %7 = sst [smem:[#allocation3]] %s0
  $region1: #{tpu_custom_call.1} parent=0
    #allocation4 [shape = 'u8[16384]{0}', space=vmem, size = 0x4000, scoped, tag = 'input window, operand 1, single buffered']
    #allocation5 [shape = 's32[1]{0}', space=sflag, size = 0x4, scoped, tag = 'scoped memory for tpu_custom_call.1']
    #allocation6 [shape = 's32[1]{0}', space=sflag, size = 0x4, scoped, tag = 'scoped memory for tpu_custom_call.1']
    #allocation7 [shape = 'u8[16384]{0}', space=vmem, size = 0x4000, scoped, tag = 'output window, operand 0, single buffered']
    %8 = vsyncpa [#allocation5], 0
    %9 = vsyncpa [#allocation6], 0
    // Predicated region
    $region2: #{tpu_custom_call.1} parent=1 // pred_check
      _
    $region3: #{tpu_custom_call.1} parent=1 // pred_check_branch
      %11 = sbr.rel (0) target = $region5
    $region4: #{tpu_custom_call.1} parent=1 // pred_region
      %s13 = ssub.s32 512, 64
      %14 = vsyncadd [#allocation5], %s13
      %s15 = sshll.u32 [#allocation4], 4
      %s16 = int_to_ptr.vmem [resolvable:$true] %s15
      %21 = dma.hbm_to_vmem [thread:$0]  %s1, 64, %s16, [#allocation5], 64, 64, 4
    $region5: #{tpu_custom_call.1} parent=1 // pred_fallthru
      _
    // Predicated region
    $region6: #{tpu_custom_call.1} parent=1 // pred_check
      _
    $region7: #{tpu_custom_call.1} parent=1 // pred_check_branch
      %23 = sbr.rel (0) target = $region9
    $region8: #{tpu_custom_call.1} parent=1 // pred_region
      %24 = dma.done [#allocation5], 512
    $region9: #{tpu_custom_call.1} parent=1 // pred_fallthru
      _
    %v25 = vld [vmem:[#allocation4] sm:$0xf]
    %v26 = vld [vmem:[#allocation4 + $0x4] sm:$0xf]
    %v27 = vld [vmem:[#allocation4 + $0x8] sm:$0xf]
    %v28 = vld [vmem:[#allocation4 + $0xc] sm:$0xf]
    %v29 = vld [vmem:[#allocation4 + $0x10] sm:$0xf]
    %v30 = vld [vmem:[#allocation4 + $0x14] sm:$0xf]
    %v31 = vld [vmem:[#allocation4 + $0x18] sm:$0xf]
    %v32 = vld [vmem:[#allocation4 + $0x1c] sm:$0xf]
    %s33 = sld [smem:[#allocation3]]
    %v34 = vstv %s33
    %v35 = vmul.f32 %v25, %v34
    %v36 = vmul.f32 %v26, %v34
    %v37 = vmul.f32 %v27, %v34
    %v38 = vmul.f32 %v28, %v34
    %v39 = vmul.f32 %v29, %v34
    %v40 = vmul.f32 %v30, %v34
    %v41 = vmul.f32 %v31, %v34
    %v42 = vmul.f32 %v32, %v34
    %v43 = vlaneseq
    %vm44 = vcmp.ge.s32.totalorder %v43, 0
    %vm45 = vcmp.lt.s32.totalorder %v43, 512
    %vm46 = vmand %vm44, %vm45
    %47 = vst.msk [vmem:[#allocation7] sm:$0xf] %vm46, %v35
    %48 = vst.msk [vmem:[#allocation7 + $0x4] sm:$0xf] %vm46, %v36
    %49 = vst.msk [vmem:[#allocation7 + $0x8] sm:$0xf] %vm46, %v37
    %50 = vst.msk [vmem:[#allocation7 + $0xc] sm:$0xf] %vm46, %v38
    %51 = vst.msk [vmem:[#allocation7 + $0x10] sm:$0xf] %vm46, %v39
    %52 = vst.msk [vmem:[#allocation7 + $0x14] sm:$0xf] %vm46, %v40
    %53 = vst.msk [vmem:[#allocation7 + $0x18] sm:$0xf] %vm46, %v41
    %54 = vst.msk [vmem:[#allocation7 + $0x1c] sm:$0xf] %vm46, %v42
    // Predicated region
    $region10: #{tpu_custom_call.1} parent=1 // pred_check
      _
    $region11: #{tpu_custom_call.1} parent=1 // pred_check_branch
      %56 = sbr.rel (0) target = $region13
    $region12: #{tpu_custom_call.1} parent=1 // pred_region
      %s58 = ssub.s32 512, 64
      %59 = vsyncadd [#allocation6], %s58
      %s60 = sshll.u32 [#allocation7], 4
      %s61 = int_to_ptr.vmem [resolvable:$true] %s60
      %66 = dma.vmem_to_hbm [thread:$0]  %s61, 64, %s2, [#allocation6], 64, 64, 4
    $region13: #{tpu_custom_call.1} parent=1 // pred_fallthru
      _
    // Predicated region
    $region14: #{tpu_custom_call.1} parent=1 // pred_check
      _
    $region15: #{tpu_custom_call.1} parent=1 // pred_check_branch
      %68 = sbr.rel (0) target = $region17
    $region16: #{tpu_custom_call.1} parent=1 // pred_region
      %69 = dma.done [#allocation6], 512
    $region17: #{tpu_custom_call.1} parent=1 // pred_fallthru
      _
    %70 = vsyncpa [#allocation5], 1
    %71 = vsyncpa [#allocation6], 1

</llo_original>
